<compile_context>
chip_gen: v7x
topology: tpu7x:2x2x1
jax: 0.10.0
libtpu: 0.0.40
codegen_flags: <defaults>
</compile_context>

<pallas_src>
import functools
import math
from typing import NamedTuple

import jax
import jax.numpy as jnp
from jax.experimental import pallas as pl
from jax.experimental.pallas import tpu as pltpu


# ---------------------------------------------------------------------------
# helpers
# ---------------------------------------------------------------------------
def _round_up(v, m):
    return ((v + m - 1) // m) * m


def _min_sublane(dtype):
    # Native TPU sublane packing: 4-byte -> 8, 2-byte (bf16) -> 16, 1-byte -> 32.
    return {4: 8, 2: 16, 1: 32}.get(jnp.dtype(dtype).itemsize, 8)


def _device_kind():
    try:
        return jax.devices()[0].device_kind.lower()
    except Exception:  # pragma: no cover - defensive
        return ""


def _default_tiles():
    kind = _device_kind()
    if "v7" in kind or "7x" in kind:
        # crossover ~310 FLOP/B; 768-tiles are compute-bound and fit 64 MiB VMEM.
        return 768, 768, 2048
    if "v6" in kind:
        # crossover ~640-715 FLOP/B; needs big tiles + vmem_limit bump.
        return 1280, 1280, 2048
    if "v5" in kind:
        # crossover ~240 FLOP/B; 512-tiles fit the 16 MiB scoped default... with bump.
        return 512, 512, 1024
    return 512, 512, 1024


def _vmem_limit_bytes(tm, tn, tk, x_bytes, w_bytes, o_bytes):
    # double-buffered x/W/out tiles + inv-norm row + f32 accumulator scratch.
    ws = 2 * (tm * tk * x_bytes + tk * tn * w_bytes + tm * tn * o_bytes + tn * 4)
    ws += tm * tn * 4
    kind = _device_kind()
    cap = (56 << 20) if ("v7" in kind or "7x" in kind) else (110 << 20)
    return int(max(32 << 20, min(int(ws * 1.25) + (2 << 20), cap)))


def _aligned_divisor(total, align, max_val):
    """Largest multiple of `align` that divides `total` and is <= max_val (>= align)."""
    best = align
    d = align
    while d <= min(total, max_val):
        if total % d == 0:
            best = d
        d += align
    return best


# ---------------------------------------------------------------------------
# Pre-pass (one-time): inv_norm[j] = 1 / max(||W[:, j]||_2, 1e-12)
# ---------------------------------------------------------------------------
def _col_inv_norm_kernel(w_ref, inv_ref, ss_ref):
    k = pl.program_id(1)

    @pl.when(k == 0)
    def _init():
        ss_ref[...] = jnp.zeros_like(ss_ref)

    w = w_ref[...].astype(jnp.float32)                  # f32 sum-of-squares accum
    ss_ref[...] += jnp.sum(w * w, axis=0, keepdims=True)

    @pl.when(k == pl.num_programs(1) - 1)
    def _finalize():
        norm = jnp.maximum(jnp.sqrt(ss_ref[...]), 1e-12)  # F.normalize eps
        inv_ref[...] = 1.0 / norm                         # one-shot, keep exact


def _col_inv_norms(w_pad):
    k_pad, n_pad = w_pad.shape
    wb = jnp.dtype(w_pad.dtype).itemsize
    # Pure HBM streaming; modest blocks (<= ~2 MiB) keep it safe on every
    # generation's scoped-VMEM default.  This runs once, off the hot path.
    pn = _aligned_divisor(n_pad, 128, 1024)
    pk = _aligned_divisor(k_pad, 128, max(128, (2 << 20) // max(1, pn * wb)))
    return pl.pallas_call(
        _col_inv_norm_kernel,
        out_shape=jax.ShapeDtypeStruct((1, n_pad), jnp.float32),
        grid_spec=pltpu.PrefetchScalarGridSpec(
            num_scalar_prefetch=0,
            grid=(n_pad // pn, k_pad // pk),
            in_specs=[pl.BlockSpec((pk, pn), lambda j, k: (k, j))],
            out_specs=pl.BlockSpec((1, pn), lambda j, k: (0, j)),
            scratch_shapes=[pltpu.VMEM((1, pn), jnp.float32)],
        ),
        compiler_params=pltpu.CompilerParams(
            dimension_semantics=("parallel", "arbitrary")),
    )(w_pad)


# ---------------------------------------------------------------------------
# Hot path: tiled matmul, per-column rescale applied on the final K step.
# ---------------------------------------------------------------------------
def _norm_matmul_kernel(x_ref, w_ref, inv_ref, o_ref, acc_ref, *, precision):
    k = pl.program_id(2)

    @pl.when(k == 0)
    def _init():
        acc_ref[...] = jnp.zeros_like(acc_ref)

    acc_ref[...] += jnp.dot(x_ref[...], w_ref[...],
                            preferred_element_type=jnp.float32,
                            precision=precision)

    @pl.when(k == pl.num_programs(2) - 1)
    def _finalize():
        # (tm, tn) * (1, tn) broadcast — cheap output-tile rescale, no divide.
        o_ref[...] = (acc_ref[...] * inv_ref[...]).astype(o_ref.dtype)


class PreparedNormLinear(NamedTuple):
    w_pad: jax.Array      # (k_pad, n_pad) zero-padded weight
    inv_norm: jax.Array   # (1, n_pad) f32 per-column inverse norms
    in_dim: int
    out_dim: int
    tn: int
    tk: int
    cast_to_bf16: bool


def prepare_norm_linear(weight, *, tile_n=None, tile_k=None, cast_to_bf16=False):
    """One-time setup: pad W once, compute column inverse norms once."""
    in_dim, out_dim = weight.shape
    _, dtn, dtk = _default_tiles()
    tn = tile_n if tile_n is not None else min(dtn, _round_up(out_dim, 128))
    tk = tile_k if tile_k is not None else min(dtk, _round_up(in_dim, 128))

    k_pad = _round_up(in_dim, tk)
    n_pad = _round_up(out_dim, tn)

    w_pad = weight
    if (k_pad, n_pad) != weight.shape:
        # NOTE: padding MUST be zeros; padded output columns rely on acc == 0
        # so that 0 * inv_norm(== 1e12 for an all-zero column) == 0.
        w_pad = jnp.pad(weight, ((0, k_pad - in_dim), (0, n_pad - out_dim)))

    inv_norm = _col_inv_norms(w_pad)          # computed on the original dtype

    if cast_to_bf16 and w_pad.dtype != jnp.bfloat16:
        # Numerics trade-off: native bf16 MXU path (f32 accumulation kept).
        w_pad = w_pad.astype(jnp.bfloat16)

    return PreparedNormLinear(w_pad, inv_norm, in_dim, out_dim, tn, tk,
                              cast_to_bf16)


def norm_linear_apply(x, prepared: PreparedNormLinear, *, tile_m=None):
    """x: (..., in_dim) -> (..., out_dim). Hot path: one pallas_call."""
    in_dim, out_dim = prepared.in_dim, prepared.out_dim
    w_pad, inv_norm = prepared.w_pad, prepared.inv_norm
    tk, tn = prepared.tk, prepared.tn
    k_pad, n_pad = w_pad.shape

    out_dtype = x.dtype
    lead_shape = x.shape[:-1]
    x2d = x.reshape(-1, in_dim)
    if prepared.cast_to_bf16 and x2d.dtype != jnp.bfloat16:
        x2d = x2d.astype(jnp.bfloat16)
    m = x2d.shape[0]

    dtm, _, _ = _default_tiles()
    sub = _min_sublane(x2d.dtype)              # dtype-aware sublane clamp
    tm = tile_m if tile_m is not None else min(dtm, _round_up(m, sub))
    m_pad = _round_up(m, tm)

    x_p = x2d
    if (m_pad, k_pad) != x2d.shape:
        x_p = jnp.pad(x2d, ((0, m_pad - m), (0, k_pad - in_dim)))

    # Faithful f32 semantics when operands are f32; bf16 operands are native.
    if x_p.dtype == jnp.float32 or w_pad.dtype == jnp.float32:
        precision = jax.lax.Precision.HIGHEST
    else:
        precision = None

    vmem_limit = _vmem_limit_bytes(
        tm, tn, tk,
        jnp.dtype(x_p.dtype).itemsize,
        jnp.dtype(w_pad.dtype).itemsize,
        jnp.dtype(out_dtype).itemsize)

    out = pl.pallas_call(
        functools.partial(_norm_matmul_kernel, precision=precision),
        out_shape=jax.ShapeDtypeStruct((m_pad, n_pad), out_dtype),
        grid_spec=pltpu.PrefetchScalarGridSpec(
            num_scalar_prefetch=0,
            grid=(m_pad // tm, n_pad // tn, k_pad // tk),
            in_specs=[
                pl.BlockSpec((tm, tk), lambda i, j, k: (i, k)),   # x tile
                pl.BlockSpec((tk, tn), lambda i, j, k: (k, j)),   # W tile
                pl.BlockSpec((1, tn), lambda i, j, k: (0, j)),    # inv-norms
            ],
            out_specs=pl.BlockSpec((tm, tn), lambda i, j, k: (i, j)),
            scratch_shapes=[pltpu.VMEM((tm, tn), jnp.float32)],
        ),
        compiler_params=pltpu.CompilerParams(
            dimension_semantics=("parallel", "parallel", "arbitrary"),
            vmem_limit_bytes=vmem_limit),
    )(x_p, w_pad, inv_norm)

    return out[:m, :out_dim].reshape(*lead_shape, out_dim)


def norm_linear(x, weight, *, tile_m=None, tile_n=None, tile_k=None,
                cast_to_bf16=False):
    """One-shot convenience (prepare + apply). For repeated calls with a fixed
    weight (inference), call prepare_norm_linear once and reuse it."""
    prepared = prepare_norm_linear(weight, tile_n=tile_n, tile_k=tile_k,
                                   cast_to_bf16=cast_to_bf16)
    return norm_linear_apply(x, prepared, tile_m=tile_m)


def init_norm_linear_weight(key, in_dim, out_dim, dtype=jnp.float32):
    # xavier_uniform_ with gain = calculate_gain('relu') = sqrt(2)
    gain = math.sqrt(2.0)
    bound = gain * math.sqrt(6.0 / (in_dim + out_dim))
    return jax.random.uniform(key, (in_dim, out_dim), dtype=dtype,
                              minval=-bound, maxval=bound)


if __name__ == "__main__":
    key = jax.random.PRNGKey(0)
    k_x, k_w = jax.random.split(key)

    batch, seq, in_dim, out_dim = 2, 8, 32, 64
    x = jax.random.normal(k_x, (batch, seq, in_dim), dtype=jnp.float32)
    weight = init_norm_linear_weight(k_w, in_dim, out_dim)

    # Hot-path usage: prepare once, apply per forward.
    prepared = prepare_norm_linear(weight)
    out = jax.block_until_ready(norm_linear_apply(x, prepared))

    # One-shot convenience path should match.
    out_oneshot = jax.block_until_ready(norm_linear(x, weight))

    # Reference: x @ F.normalize(W, dim=0)
    w_ref = weight / jnp.maximum(
        jnp.sqrt(jnp.sum(weight.astype(jnp.float32) ** 2, axis=0,
                         keepdims=True)), 1e-12)
    ref = jnp.einsum("bsi,io->bso", x, w_ref,
                     precision=jax.lax.Precision.HIGHEST)

    assert out.shape == (batch, seq, out_dim)
    err = float(jnp.max(jnp.abs(out - ref)))
    assert jnp.allclose(out, ref, atol=2e-3, rtol=2e-3), err
    assert jnp.allclose(out_oneshot, ref, atol=2e-3, rtol=2e-3)

    print("KERNEL_OK")
</pallas_src>

<mosaic_0001>
module attributes {stable_mosaic.version = 11 : i64} {
  func.func @_col_inv_norm_kernel(%arg0: i32, %arg1: i32, %arg2: memref<128x128xf32, #tpu.memory_space<vmem>>, %arg3: memref<1x128xf32, #tpu.memory_space<vmem>>, %arg4: memref<1x128xf32, #tpu.memory_space<vmem>>) attributes {dimension_semantics = [#tpu.dimension_semantics<parallel>, #tpu.dimension_semantics<arbitrary>], iteration_bounds = array<i64: 1, 1>, scalar_prefetch = 0 : i64, scratch_operands = 1 : i64, tpu.core_type = #tpu.core_type<tc>, window_params = [{transform_indices = @transform_0, window_bounds = array<i64: 128, 128>}, {transform_indices = @transform_1, window_bounds = array<i64: 1, 128>}]} {
    %c0_i32 = arith.constant 0 : i32
    %0 = arith.cmpi eq, %arg1, %c0_i32 : i32
    %1 = arith.extui %0 : i1 to i32
    %c0_i32_0 = arith.constant 0 : i32
    %2 = arith.cmpi ne, %1, %c0_i32_0 : i32
    scf.if %2 {
      %cst_8 = arith.constant 0.000000e+00 : f32
      %13 = vector.broadcast %cst_8 : f32 to vector<1x128xf32>
      %c0_9 = arith.constant 0 : index
      %c0_10 = arith.constant 0 : index
      %14 = vector.load %arg4[%c0_9, %c0_10] : memref<1x128xf32, #tpu.memory_space<vmem>>, vector<1x128xf32>
      tpu.vector_store %arg4[%c0_9, %c0_10], %13 {strides = array<i32>} : memref<1x128xf32, #tpu.memory_space<vmem>>, vector<1x128xf32>,
    } else {
    }
    %c0 = arith.constant 0 : index
    %c0_1 = arith.constant 0 : index
    %3 = vector.load %arg2[%c0, %c0_1] : memref<128x128xf32, #tpu.memory_space<vmem>>, vector<128x128xf32>
    %c0_2 = arith.constant 0 : index
    %c0_3 = arith.constant 0 : index
    %4 = vector.load %arg4[%c0_2, %c0_3] : memref<1x128xf32, #tpu.memory_space<vmem>>, vector<1x128xf32>
    %5 = arith.mulf %3, %3 : vector<128x128xf32>
    %cst = arith.constant dense<0.000000e+00> : vector<128xf32>
    %6 = vector.multi_reduction <add>, %5, %cst [0] : vector<128x128xf32> to vector<128xf32>
    %7 = vector.shape_cast %6 : vector<128xf32> to vector<1x128xf32>
    %8 = arith.addf %4, %7 : vector<1x128xf32>
    %c0_4 = arith.constant 0 : index
    %c0_5 = arith.constant 0 : index
    %9 = vector.load %arg4[%c0_4, %c0_5] : memref<1x128xf32, #tpu.memory_space<vmem>>, vector<1x128xf32>
    tpu.vector_store %arg4[%c0_4, %c0_5], %8 {strides = array<i32>} : memref<1x128xf32, #tpu.memory_space<vmem>>, vector<1x128xf32>,
    %c0_i32_6 = arith.constant 0 : i32
    %10 = arith.cmpi eq, %arg1, %c0_i32_6 : i32
    %11 = arith.extui %10 : i1 to i32
    %c0_i32_7 = arith.constant 0 : i32
    %12 = arith.cmpi ne, %11, %c0_i32_7 : i32
    scf.if %12 {
      %c0_8 = arith.constant 0 : index
      %c0_9 = arith.constant 0 : index
      %13 = vector.load %arg4[%c0_8, %c0_9] : memref<1x128xf32, #tpu.memory_space<vmem>>, vector<1x128xf32>
      %14 = math.sqrt %13 : vector<1x128xf32>
      %cst_10 = arith.constant 9.99999996E-13 : f32
      %15 = vector.broadcast %cst_10 : f32 to vector<1x128xf32>
      %16 = arith.maximumf %14, %15 : vector<1x128xf32>
      %cst_11 = arith.constant 1.000000e+00 : f32
      %17 = vector.broadcast %cst_11 : f32 to vector<1x128xf32>
      %18 = arith.divf %17, %16 : vector<1x128xf32>
      %c0_12 = arith.constant 0 : index
      %c0_13 = arith.constant 0 : index
      %19 = vector.load %arg3[%c0_12, %c0_13] : memref<1x128xf32, #tpu.memory_space<vmem>>, vector<1x128xf32>
      tpu.vector_store %arg3[%c0_12, %c0_13], %18 {strides = array<i32>} : memref<1x128xf32, #tpu.memory_space<vmem>>, vector<1x128xf32>,
    } else {
    }
    return
  }
  func.func @transform_0(%arg0: i32, %arg1: i32) -> (i32, i32) {
    %c0_i32 = arith.constant 0 : i32
    return %arg1, %arg0 : i32, i32
  }
  func.func @transform_1(%arg0: i32, %arg1: i32) -> (i32, i32) {
    %c0_i32 = arith.constant 0 : i32
    %c0_i32_0 = arith.constant 0 : i32
    return %c0_i32, %arg0 : i32, i32
  }
}

</mosaic_0001>

<llo_original>
// kernel: tpu_custom_call.1
$region0: #{tpu_custom_call.1}
  #allocation0 [shape = 'u32[]', space=smem, size = 0x4, offset = 0x4, fixed_abs, tag = 'smem constant byte address 0x4 - core index']
  #allocation1 [shape = 'u32[144,128]{1,0:T(1,128)}', space=vmem, size = 0x12000, scoped, tag = 'internal scratch']
  #allocation2 [shape = 'f32[1,128]{1,0:T(1,128)}', space=vmem, size = 0x200, scoped, tag = 'scratch operand']
  %s0 = inlined_call_operand.hbm [shape: f32[128,128], index: 0, kind: input, shape index: {}]
  %s1 = inlined_call_operand.hbm [shape: f32[1,128], index: 1, kind: output, shape index: {}]
  %s2 = sld [smem:[#allocation0]]
  $region26: #{tpu_custom_call.1} parent=0
    _
  %s4 = ssub.s32 1, %s2
  %s5 = scalar_select 0, %s4, %s2
  $region1: #{tpu_custom_call.1} parent=0
    #allocation3 [shape = 'u8[65536]{0}', space=vmem, size = 0x10000, scoped, tag = 'input window, operand 0, single buffered']
    #allocation4 [shape = 's32[1]{0}', space=sflag, size = 0x4, scoped, tag = 'scoped memory for tpu_custom_call.1']
    #allocation5 [shape = 's32[1]{0}', space=sflag, size = 0x4, scoped, tag = 'scoped memory for tpu_custom_call.1']
    #allocation6 [shape = 'u8[512]{0}', space=vmem, size = 0x400, scoped, tag = 'output window, operand 0, single buffered']
    %6 = vsyncpa [#allocation4], 0
    %7 = vsyncpa [#allocation5], 0
    // Predicated region
    $region2: #{tpu_custom_call.1} parent=1 // pred_check
      _
    $region3: #{tpu_custom_call.1} parent=1 // pred_check_branch
      %9 = sbr.rel (0) target = $region5
    $region4: #{tpu_custom_call.1} parent=1 // pred_region
      %s11 = ssub.s32 2048, 2048
      %12 = vsyncadd [#allocation4], %s11
      %s13 = sshll.u32 [#allocation3], 4
      %s14 = int_to_ptr.vmem [resolvable:$true] %s13
      %19 = dma.hbm_to_vmem [thread:$0]  %s0, 2048, %s14, [#allocation4], 128, 128, 8
    $region5: #{tpu_custom_call.1} parent=1 // pred_fallthru
      _
    // Predicated region
    $region6: #{tpu_custom_call.1} parent=1 // pred_check
      _
    $region7: #{tpu_custom_call.1} parent=1 // pred_check_branch
      %21 = sbr.rel (0) target = $region9
    $region8: #{tpu_custom_call.1} parent=1 // pred_region
      %22 = dma.done [#allocation4], 2048
    $region9: #{tpu_custom_call.1} parent=1 // pred_fallthru
      _
    %p23 = scmp.eq.s32.totalorder 0, 0
    // Predicated region
    $region10: #{tpu_custom_call.1} parent=1 // pred_check
      %p24 = pneg %p23
    $region11: #{tpu_custom_call.1} parent=1 // pred_check_branch
      %26 = sbr.rel (%p24) target = $region13
    $region12: #{tpu_custom_call.1} parent=1 // pred_region
      %27 = vst [vmem:[#allocation2] sm:$0x1] 0.0
    $region13: #{tpu_custom_call.1} parent=1 // pred_fallthru
      _
    %v28 = vld [vmem:[#allocation3] sm:$0xff]
    %v29 = vld [vmem:[#allocation3 + $0x8] sm:$0xff]
    %v30 = vld [vmem:[#allocation3 + $0x10] sm:$0xff]
    %v31 = vld [vmem:[#allocation3 + $0x18] sm:$0xff]
    %v32 = vld [vmem:[#allocation3 + $0x20] sm:$0xff]
    %v33 = vld [vmem:[#allocation3 + $0x28] sm:$0xff]
    %v34 = vld [vmem:[#allocation3 + $0x30] sm:$0xff]
    %v35 = vld [vmem:[#allocation3 + $0x38] sm:$0xff]
    %v36 = vld [vmem:[#allocation3 + $0x40] sm:$0xff]
    %v37 = vld [vmem:[#allocation3 + $0x48] sm:$0xff]
    %v38 = vld [vmem:[#allocation3 + $0x50] sm:$0xff]
    %v39 = vld [vmem:[#allocation3 + $0x58] sm:$0xff]
    %v40 = vld [vmem:[#allocation3 + $0x60] sm:$0xff]
    %v41 = vld [vmem:[#allocation3 + $0x68] sm:$0xff]
    %v42 = vld [vmem:[#allocation3 + $0x70] sm:$0xff]
    %v43 = vld [vmem:[#allocation3 + $0x78] sm:$0xff]
    %v44 = vld [vmem:[#allocation2] sm:$0x1]
    %v45 = vmul.f32 %v28, %v28
    %v46 = vmul.f32 %v29, %v29
    %v47 = vmul.f32 %v30, %v30
    %v48 = vmul.f32 %v31, %v31
    %v49 = vmul.f32 %v32, %v32
    %v50 = vmul.f32 %v33, %v33
    %v51 = vmul.f32 %v34, %v34
    %v52 = vmul.f32 %v35, %v35
    %v53 = vmul.f32 %v36, %v36
    %v54 = vmul.f32 %v37, %v37
    %v55 = vmul.f32 %v38, %v38
    %v56 = vmul.f32 %v39, %v39
    %v57 = vmul.f32 %v40, %v40
    %v58 = vmul.f32 %v41, %v41
    %v59 = vmul.f32 %v42, %v42
    %v60 = vmul.f32 %v43, %v43
    %v61 = vadd.f32 %v45, %v46
    %v62 = vadd.f32 %v61, %v47
    %v63 = vadd.f32 %v62, %v48
    %v64 = vadd.f32 %v63, %v49
    %v65 = vadd.f32 %v64, %v50
    %v66 = vadd.f32 %v65, %v51
    %v67 = vadd.f32 %v66, %v52
    %v68 = vadd.f32 %v67, %v53
    %v69 = vadd.f32 %v68, %v54
    %v70 = vadd.f32 %v69, %v55
    %v71 = vadd.f32 %v70, %v56
    %v72 = vadd.f32 %v71, %v57
    %v73 = vadd.f32 %v72, %v58
    %v74 = vadd.f32 %v73, %v59
    %v75 = vadd.f32 %v74, %v60
    %v76 = vrot.slane %v75, 4
    %v77 = vadd.f32 %v75, %v76
    %v78 = vrot.slane %v77, 2
    %v79 = vadd.f32 %v77, %v78
    %v80 = vrot.slane %v79, 1
    %v81 = vadd.f32 %v79, %v80
    %v82 = vadd.f32 %v44, %v81
    %83 = vst [vmem:[#allocation2] sm:$0x1] %v82
    // Predicated region
    $region14: #{tpu_custom_call.1} parent=1 // pred_check
      %p84 = pneg %p23
    $region15: #{tpu_custom_call.1} parent=1 // pred_check_branch
      %86 = sbr.rel (%p84) target = $region17
    $region16: #{tpu_custom_call.1} parent=1 // pred_region
      %v87 = vld [vmem:[#allocation2] sm:$0x1]
      %v88 = vrsqrt.pop %v87
      %v89 = vmul.f32 %v87, %v88
      %vm90 = vcmp.eq.f32.partialorder %v87, inf
      %v91 = vsel %vm90, %v87, %v89
      %vm92 = vcmp.eq.f32.partialorder %v87, 0.0
      %v93 = vand.u32 %v87, 2147483648
      %v94 = vsel %vm92, %v93, %v91
      %v95 = vmax.f32 %v94, 1e-12
      %v96 = vrcp.pop %v95
      %v97 = vmul.f32 1.0, %v96
      %98 = vst [vmem:[#allocation6] sm:$0x1] %v97
    $region17: #{tpu_custom_call.1} parent=1 // pred_fallthru
      _
    // Predicated region
    $region18: #{tpu_custom_call.1} parent=1 // pred_check
      _
    $region19: #{tpu_custom_call.1} parent=1 // pred_check_branch
      %100 = sbr.rel (0) target = $region21
    $region20: #{tpu_custom_call.1} parent=1 // pred_region
      %s102 = ssub.s32 16, 16
      %103 = vsyncadd [#allocation5], %s102
      %s105 = sshll.u32 [#allocation6], 4
      %s106 = int_to_ptr.vmem [resolvable:$true] %s105
      %108 = dma.vmem_to_hbm [thread:$0]  %s106, 16, %s1, [#allocation5]
    $region21: #{tpu_custom_call.1} parent=1 // pred_fallthru
      _
    // Predicated region
    $region22: #{tpu_custom_call.1} parent=1 // pred_check
      _
    $region23: #{tpu_custom_call.1} parent=1 // pred_check_branch
      %110 = sbr.rel (0) target = $region25
    $region24: #{tpu_custom_call.1} parent=1 // pred_region
      %111 = dma.done [#allocation5], 16
    $region25: #{tpu_custom_call.1} parent=1 // pred_fallthru
      _
    %112 = vsyncpa [#allocation4], 1
    %113 = vsyncpa [#allocation5], 1

</llo_original>
